<compile_context>
chip_gen: v5e
topology: v5e:2x2
jax: 0.10.0
libtpu: 0.0.40
codegen_flags: <defaults>
</compile_context>

<pallas_src>
import jax
import jax.numpy as jnp
from jax import lax
from jax.experimental import pallas as pl
from jax.experimental.pallas import tpu as pltpu

# ---- small, module-consistent config ---------------------------------------
N            = 4          # batch
T            = 8          # feature-frame length
D_FEAT       = 1024       # xlsr53 feature dim (fixed by reduce_dim = Linear(1024, E))
DOWNSAMPLE   = 320        # wav2vec downsampling rate used by _mean_pool
T_RAW        = T * DOWNSAMPLE
EMBED_DIM    = 128        # args.lan_codebook_dim
TEMPLATE_NUM = 4          # args.lan_codebooks
N_CLASSES    = 10
BN_EPS       = 1e-5
INV_SQRT_KEY_DIM = 1.0 / (EMBED_DIM ** 0.5)

# ---- row-slab layout ([4 + TEMPLATE_NUM, EMBED_DIM] f32) --------------------
SLAB_B_REDQ = 0
SLAB_VBANK  = 1
SLAB_GAMMA  = 1 + TEMPLATE_NUM
SLAB_BETA   = 2 + TEMPLATE_NUM
SLAB_BFC    = 3 + TEMPLATE_NUM
SLAB_ROWS   = 4 + TEMPLATE_NUM          # = 8

# ---- packed lane-dense output tile layout ([8, 128] f32) --------------------
OUT_ROWS = 8
OUT_COLS = 128
COL_LOGP = 0
COL_ATTN = N_CLASSES
COL_DIV  = N_CLASSES + TEMPLATE_NUM


def lid_xlsr53_kernel(pooled_ref, w_redq_ref, wmat_ref, slab_ref, out_ref):
    n = pooled_ref.shape[0]

    # ---- unpack the two parameter slabs (static slices; zero-cost views) -----
    slab = slab_ref[...]                                          # [8, 128] f32
    b_redq = slab[SLAB_B_REDQ:SLAB_B_REDQ + 1, :]                 # [1, E]
    v_bank = slab[SLAB_VBANK:SLAB_VBANK + TEMPLATE_NUM, :]        # [K, E]
    gamma  = slab[SLAB_GAMMA:SLAB_GAMMA + 1, :]                   # [1, E]
    beta   = slab[SLAB_BETA:SLAB_BETA + 1, :]                     # [1, E]
    b_fc   = slab[SLAB_BFC:SLAB_BFC + 1, 0:N_CLASSES]             # [1, 10]

    wmat = wmat_ref[...]                                          # [E, K+10] f32
    k_t  = wmat[:, 0:TEMPLATE_NUM]                                # [E, K] (1/sqrt(E) pre-folded)
    w_fc = wmat[:, TEMPLATE_NUM:TEMPLATE_NUM + N_CLASSES]         # [E, 10]

    # ---- q = mean_pool(feats) @ (W_red @ W_q) + b_red @ W_q ------------------
    # (masked time pool + inv_len already applied in the wrapper; bf16 operands,
    #  f32 MXU accumulation)
    q = jnp.dot(pooled_ref[...], w_redq_ref[...],
                preferred_element_type=jnp.float32) + b_redq      # [N, E] f32

    # ---- STL single-head attention over precomputed key/value banks ----------
    scores = jnp.dot(q, k_t, preferred_element_type=jnp.float32)  # [N, K]
    scores = scores - jnp.max(scores, axis=-1, keepdims=True)
    e = jnp.exp(scores)
    attn = e / jnp.sum(e, axis=-1, keepdims=True)                 # softmax over K
    style = jnp.dot(attn, v_bank,
                    preferred_element_type=jnp.float32)           # [N, E]

    # ---- BatchNorm1d (fresh-module training-mode batch statistics) + ReLU ----
    mu = jnp.mean(style, axis=0, keepdims=True)                   # [1, E]
    var = jnp.mean((style - mu) ** 2, axis=0, keepdims=True)      # biased variance
    bn = (style - mu) * lax.rsqrt(var + BN_EPS) * gamma + beta
    h = jnp.maximum(bn, 0.0)

    # ---- fc: Linear(E -> 10) + log_softmax -----------------------------------
    logits = jnp.dot(h, w_fc, preferred_element_type=jnp.float32) + b_fc   # [N, 10]
    z = logits - jnp.max(logits, axis=-1, keepdims=True)
    logp = z - jnp.log(jnp.sum(jnp.exp(z), axis=-1, keepdims=True))

    # ---- attention_diversity_measure -----------------------------------------
    d = jnp.mean(attn * jnp.log(attn + 1e-7), axis=0, keepdims=True)       # [1, K]
    div = jnp.sum(jnp.exp(-d), keepdims=True)                              # [1, 1]

    # ---- single lane-dense [8,128] output tile (one writeback DMA) -----------
    out_ref[...] = jnp.zeros((OUT_ROWS, OUT_COLS), jnp.float32)
    out_ref[0:n, COL_LOGP:COL_LOGP + N_CLASSES] = logp
    out_ref[0:n, COL_ATTN:COL_ATTN + TEMPLATE_NUM] = attn
    out_ref[0:1, COL_DIV:COL_DIV + 1] = div


def fold_params(params):
    """Call-invariant algebraic folding / packing, done once at parameter-load time."""
    # reduce_dim folded with W_query (one fewer MXU matmul per call).
    w_redq = jnp.dot(params["w_red"], params["wq"]).astype(jnp.bfloat16)   # [D, E] bf16
    b_redq = jnp.dot(params["b_red"], params["wq"])                        # [1, E] f32
    banks = jnp.tanh(params["embed"])                                      # [K, E]
    # key bank pre-transposed to [E, K] with the 1/sqrt(key_dim) score scale folded in
    # (no in-kernel relayout of k).
    k_t = (jnp.dot(banks, params["wk"]) * INV_SQRT_KEY_DIM).T              # [E, K]
    v_bank = jnp.dot(banks, params["wv"])                                  # [K, E]
    # column-weight slab: everything that contracts against a [*, E] activation.
    wmat = jnp.concatenate([k_t, params["w_fc"]], axis=1).astype(jnp.float32)   # [E, K+10]
    # row slab: every [1/K, E]-shaped parameter -> one DMA instead of six.
    b_fc_row = jnp.pad(params["b_fc"], ((0, 0), (0, EMBED_DIM - N_CLASSES)))
    slab = jnp.concatenate(
        [b_redq, v_bank, params["gamma"], params["beta"], b_fc_row], axis=0
    ).astype(jnp.float32)                                                  # [SLAB_ROWS, E]
    return dict(w_redq=w_redq, wmat=wmat, slab=slab)


def lid_xlsr53_forward(feats, padding_mask, fp):
    """feats: [N, T, D_FEAT] f32; padding_mask: [N, T_RAW] bool (True = pad).

    fp: folded parameters from fold_params().
    """
    n, t, d = feats.shape
    # Masked time mean-pool fused into the wrapper (free: XLA fuses it with the
    # bf16 cast that already reads all of feats). Numerator is unmasked and only
    # the divisor uses the mask, exactly like the torch _mean_pool.
    # Clamp guards fully-padded rows (PyTorch would produce inf).
    nonpad = jnp.sum((~padding_mask).astype(jnp.float32), axis=1, keepdims=True)  # [N, 1]
    inv_len = DOWNSAMPLE / jnp.maximum(nonpad, 1.0)                                # [N, 1]
    pooled = (jnp.sum(feats, axis=1) * inv_len).astype(jnp.bfloat16)               # [N, D] bf16

    vmem = lambda: pl.BlockSpec(memory_space=pltpu.MemorySpace.VMEM)
    out = pl.pallas_call(
        lid_xlsr53_kernel,
        out_shape=jax.ShapeDtypeStruct((OUT_ROWS, OUT_COLS), jnp.float32),
        in_specs=[vmem() for _ in range(4)],
        out_specs=vmem(),
        compiler_params=pltpu.CompilerParams(vmem_limit_bytes=4 * 1024 * 1024),
    )(pooled, fp["w_redq"], fp["wmat"], fp["slab"])

    logp = out[0:n, COL_LOGP:COL_LOGP + N_CLASSES]
    attn = out[0:n, COL_ATTN:COL_ATTN + TEMPLATE_NUM]
    div = out[0, COL_DIV]
    # PyTorch MultiHeadAttention returns scores shaped [heads=1, N, T_q=1, K]
    attention_score = attn.reshape(1, n, 1, TEMPLATE_NUM)
    return logp, attention_score, div


def lid_xlsr53_reference(feats, padding_mask, fp):
    """Pure-JAX reference on the same folded params / dtype policy (for validation)."""
    nonpad = jnp.sum((~padding_mask).astype(jnp.float32), axis=1, keepdims=True)
    inv_len = DOWNSAMPLE / jnp.maximum(nonpad, 1.0)
    pooled = (jnp.sum(feats, axis=1) * inv_len).astype(jnp.bfloat16)

    slab = fp["slab"]
    b_redq = slab[SLAB_B_REDQ:SLAB_B_REDQ + 1, :]
    v_bank = slab[SLAB_VBANK:SLAB_VBANK + TEMPLATE_NUM, :]
    gamma = slab[SLAB_GAMMA:SLAB_GAMMA + 1, :]
    beta = slab[SLAB_BETA:SLAB_BETA + 1, :]
    b_fc = slab[SLAB_BFC:SLAB_BFC + 1, 0:N_CLASSES]
    k_t = fp["wmat"][:, 0:TEMPLATE_NUM]
    w_fc = fp["wmat"][:, TEMPLATE_NUM:TEMPLATE_NUM + N_CLASSES]

    q = jnp.dot(pooled, fp["w_redq"], preferred_element_type=jnp.float32) + b_redq
    attn = jax.nn.softmax(jnp.dot(q, k_t), axis=-1)
    style = jnp.dot(attn, v_bank)
    mu = jnp.mean(style, axis=0, keepdims=True)
    var = jnp.mean((style - mu) ** 2, axis=0, keepdims=True)
    h = jnp.maximum((style - mu) * lax.rsqrt(var + BN_EPS) * gamma + beta, 0.0)
    logits = jnp.dot(h, w_fc) + b_fc
    logp = jax.nn.log_softmax(logits, axis=-1)
    d = jnp.mean(attn * jnp.log(attn + 1e-7), axis=0)
    div = jnp.sum(jnp.exp(-d))
    return logp, attn, div


def make_params(key):
    ks = jax.random.split(key, 8)
    # nn.Linear weights (torch stores [out, in]; we keep the transposed [in, out])
    w_red = 0.02 * jax.random.normal(ks[0], (D_FEAT, EMBED_DIM), jnp.float32)
    b_red = 0.02 * jax.random.normal(ks[1], (1, EMBED_DIM), jnp.float32)
    # STL template banks: init.normal_(mean=0, std=0.5)
    embed = 0.5 * jax.random.normal(ks[2], (TEMPLATE_NUM, EMBED_DIM), jnp.float32)
    # MultiHeadAttention projections (bias=False)
    wq = 0.05 * jax.random.normal(ks[3], (EMBED_DIM, EMBED_DIM), jnp.float32)
    wk = 0.05 * jax.random.normal(ks[4], (EMBED_DIM, EMBED_DIM), jnp.float32)
    wv = 0.05 * jax.random.normal(ks[5], (EMBED_DIM, EMBED_DIM), jnp.float32)
    # BatchNorm1d affine params (default init: gamma=1, beta=0)
    gamma = jnp.ones((1, EMBED_DIM), jnp.float32)
    beta = jnp.zeros((1, EMBED_DIM), jnp.float32)
    # fc: Linear(E, 10)
    w_fc = 0.05 * jax.random.normal(ks[6], (EMBED_DIM, N_CLASSES), jnp.float32)
    b_fc = 0.05 * jax.random.normal(ks[7], (1, N_CLASSES), jnp.float32)
    return dict(w_red=w_red, b_red=b_red, embed=embed, wq=wq, wk=wk, wv=wv,
                gamma=gamma, beta=beta, w_fc=w_fc, b_fc=b_fc)


if __name__ == "__main__":
    key = jax.random.PRNGKey(0)
    k_feat, k_param = jax.random.split(key)

    # synthetic xlsr53 features [N, T, 1024]
    feats = jax.random.normal(k_feat, (N, T, D_FEAT), jnp.float32)

    # padding_mask over raw audio axis: True where padded
    lengths = jnp.array([T_RAW, T_RAW - 320, T_RAW - 640, T_RAW - 960], dtype=jnp.int32)
    padding_mask = jnp.arange(T_RAW)[None, :] >= lengths[:, None]          # [N, T_RAW] bool

    params = make_params(k_param)
    folded = jax.tree_util.tree_map(jax.block_until_ready, fold_params(params))

    fwd = jax.jit(lid_xlsr53_forward)
    logp, attention_score, diversity = fwd(feats, padding_mask, folded)
    jax.block_until_ready((logp, attention_score, diversity))

    assert logp.shape == (N, N_CLASSES)
    assert attention_score.shape == (1, N, 1, TEMPLATE_NUM)
    assert diversity.shape == ()
    # log-probs must exponentiate-sum to ~1 per row
    assert bool(jnp.allclose(jnp.exp(logp).sum(-1), 1.0, atol=1e-4))
    # attention scores are a softmax over codebooks
    assert bool(jnp.allclose(attention_score.sum(-1), 1.0, atol=1e-4))
    # diversity is finite and positive
    assert bool(jnp.isfinite(diversity)) and float(diversity) > 0.0

    # pure-JAX reference on the same folded params validates the kernel end-to-end
    logp_ref, attn_ref, div_ref = lid_xlsr53_reference(feats, padding_mask, folded)
    assert bool(jnp.allclose(logp, logp_ref, atol=2e-2, rtol=2e-2))
    assert bool(jnp.allclose(attention_score.reshape(N, TEMPLATE_NUM), attn_ref,
                             atol=2e-2, rtol=2e-2))
    assert bool(jnp.allclose(diversity, div_ref, atol=2e-2, rtol=2e-2))

    print("KERNEL_OK")
</pallas_src>

<mosaic_0001>
module attributes {stable_mosaic.version = 11 : i64} {
  func.func @lid_xlsr53_kernel(%arg0: memref<4x1024xbf16, #tpu.memory_space<vmem>>, %arg1: memref<1024x128xbf16, #tpu.memory_space<vmem>>, %arg2: memref<128x14xf32, #tpu.memory_space<vmem>>, %arg3: memref<8x128xf32, #tpu.memory_space<vmem>>, %arg4: memref<8x128xf32, #tpu.memory_space<vmem>>) attributes {dimension_semantics = [], scalar_prefetch = 0 : i64, scratch_operands = 0 : i64, tpu.core_type = #tpu.core_type<tc>} {
    %c0 = arith.constant 0 : index
    %c0_0 = arith.constant 0 : index
    %0 = vector.load %arg3[%c0, %c0_0] : memref<8x128xf32, #tpu.memory_space<vmem>>, vector<8x128xf32>
    %1 = vector.extract_strided_slice %0 {offsets = [0, 0], sizes = [1, 128], strides = [1, 1]} : vector<8x128xf32> to vector<1x128xf32>
    %2 = vector.extract_strided_slice %0 {offsets = [1, 0], sizes = [4, 128], strides = [1, 1]} : vector<8x128xf32> to vector<4x128xf32>
    %3 = vector.extract_strided_slice %0 {offsets = [5, 0], sizes = [1, 128], strides = [1, 1]} : vector<8x128xf32> to vector<1x128xf32>
    %4 = vector.extract_strided_slice %0 {offsets = [6, 0], sizes = [1, 128], strides = [1, 1]} : vector<8x128xf32> to vector<1x128xf32>
    %5 = vector.extract_strided_slice %0 {offsets = [7, 0], sizes = [1, 10], strides = [1, 1]} : vector<8x128xf32> to vector<1x10xf32>
    %c0_1 = arith.constant 0 : index
    %c0_2 = arith.constant 0 : index
    %6 = vector.load %arg2[%c0_1, %c0_2] : memref<128x14xf32, #tpu.memory_space<vmem>>, vector<128x14xf32>
    %7 = vector.extract_strided_slice %6 {offsets = [0, 0], sizes = [128, 4], strides = [1, 1]} : vector<128x14xf32> to vector<128x4xf32>
    %8 = vector.extract_strided_slice %6 {offsets = [0, 4], sizes = [128, 10], strides = [1, 1]} : vector<128x14xf32> to vector<128x10xf32>
    %c0_3 = arith.constant 0 : index
    %c0_4 = arith.constant 0 : index
    %9 = vector.load %arg0[%c0_3, %c0_4] : memref<4x1024xbf16, #tpu.memory_space<vmem>>, vector<4x1024xbf16>
    %c0_5 = arith.constant 0 : index
    %c0_6 = arith.constant 0 : index
    %10 = vector.load %arg1[%c0_5, %c0_6] : memref<1024x128xbf16, #tpu.memory_space<vmem>>, vector<1024x128xbf16>
    %cst = arith.constant dense<0.000000e+00> : vector<4x128xf32>
    %11 = tpu.matmul %9, %10, %cst {dimension_numbers = #tpu.dot_dimension_numbers<[1], [0], [0], [1], [0, 0, 1, 1], [], []>} : vector<4x1024xbf16>, vector<1024x128xbf16>, vector<4x128xf32> -> vector<4x128xf32>
    %12 = vector.broadcast %1 : vector<1x128xf32> to vector<4x128xf32>
    %13 = arith.addf %11, %12 : vector<4x128xf32>
    %cst_7 = arith.constant dense<0.000000e+00> : vector<4x4xf32>
    %14 = tpu.matmul %13, %7, %cst_7 {dimension_numbers = #tpu.dot_dimension_numbers<[1], [0], [0], [1], [0, 0, 1, 1], [], []>} : vector<4x128xf32>, vector<128x4xf32>, vector<4x4xf32> -> vector<4x4xf32>
    %cst_8 = arith.constant dense<0xFF800000> : vector<4xf32>
    %15 = vector.multi_reduction <maximumf>, %14, %cst_8 [1] : vector<4x4xf32> to vector<4xf32>
    %16 = vector.shape_cast %15 : vector<4xf32> to vector<4x1xf32>
    %17 = vector.broadcast %16 : vector<4x1xf32> to vector<4x4xf32>
    %18 = arith.subf %14, %17 : vector<4x4xf32>
    %19 = math.exp %18 : vector<4x4xf32>
    %cst_9 = arith.constant dense<0.000000e+00> : vector<4xf32>
    %20 = vector.multi_reduction <add>, %19, %cst_9 [1] : vector<4x4xf32> to vector<4xf32>
    %21 = vector.shape_cast %20 : vector<4xf32> to vector<4x1xf32>
    %22 = vector.broadcast %21 : vector<4x1xf32> to vector<4x4xf32>
    %23 = arith.divf %19, %22 : vector<4x4xf32>
    %cst_10 = arith.constant dense<0.000000e+00> : vector<4x128xf32>
    %24 = tpu.matmul %23, %2, %cst_10 {dimension_numbers = #tpu.dot_dimension_numbers<[1], [0], [0], [1], [0, 0, 1, 1], [], []>} : vector<4x4xf32>, vector<4x128xf32>, vector<4x128xf32> -> vector<4x128xf32>
    %cst_11 = arith.constant dense<0.000000e+00> : vector<128xf32>
    %25 = vector.multi_reduction <add>, %24, %cst_11 [0] : vector<4x128xf32> to vector<128xf32>
    %26 = vector.shape_cast %25 : vector<128xf32> to vector<1x128xf32>
    %cst_12 = arith.constant 4.000000e+00 : f32
    %27 = vector.broadcast %cst_12 : f32 to vector<1x128xf32>
    %28 = arith.divf %26, %27 : vector<1x128xf32>
    %29 = vector.broadcast %28 : vector<1x128xf32> to vector<4x128xf32>
    %30 = arith.subf %24, %29 : vector<4x128xf32>
    %31 = arith.mulf %30, %30 : vector<4x128xf32>
    %cst_13 = arith.constant dense<0.000000e+00> : vector<128xf32>
    %32 = vector.multi_reduction <add>, %31, %cst_13 [0] : vector<4x128xf32> to vector<128xf32>
    %33 = vector.shape_cast %32 : vector<128xf32> to vector<1x128xf32>
    %cst_14 = arith.constant 4.000000e+00 : f32
    %34 = vector.broadcast %cst_14 : f32 to vector<1x128xf32>
    %35 = arith.divf %33, %34 : vector<1x128xf32>
    %36 = vector.broadcast %28 : vector<1x128xf32> to vector<4x128xf32>
    %37 = arith.subf %24, %36 : vector<4x128xf32>
    %cst_15 = arith.constant 9.99999974E-6 : f32
    %38 = vector.broadcast %cst_15 : f32 to vector<1x128xf32>
    %39 = arith.addf %35, %38 : vector<1x128xf32>
    %40 = math.rsqrt %39 : vector<1x128xf32>
    %41 = vector.broadcast %40 : vector<1x128xf32> to vector<4x128xf32>
    %42 = arith.mulf %37, %41 : vector<4x128xf32>
    %43 = vector.broadcast %3 : vector<1x128xf32> to vector<4x128xf32>
    %44 = arith.mulf %42, %43 : vector<4x128xf32>
    %45 = vector.broadcast %4 : vector<1x128xf32> to vector<4x128xf32>
    %46 = arith.addf %44, %45 : vector<4x128xf32>
    %cst_16 = arith.constant 0.000000e+00 : f32
    %47 = vector.broadcast %cst_16 : f32 to vector<4x128xf32>
    %48 = arith.maximumf %46, %47 : vector<4x128xf32>
    %cst_17 = arith.constant dense<0.000000e+00> : vector<4x10xf32>
    %49 = tpu.matmul %48, %8, %cst_17 {dimension_numbers = #tpu.dot_dimension_numbers<[1], [0], [0], [1], [0, 0, 1, 1], [], []>} : vector<4x128xf32>, vector<128x10xf32>, vector<4x10xf32> -> vector<4x10xf32>
    %50 = vector.broadcast %5 : vector<1x10xf32> to vector<4x10xf32>
    %51 = arith.addf %49, %50 : vector<4x10xf32>
    %cst_18 = arith.constant dense<0xFF800000> : vector<4xf32>
    %52 = vector.multi_reduction <maximumf>, %51, %cst_18 [1] : vector<4x10xf32> to vector<4xf32>
    %53 = vector.shape_cast %52 : vector<4xf32> to vector<4x1xf32>
    %54 = vector.broadcast %53 : vector<4x1xf32> to vector<4x10xf32>
    %55 = arith.subf %51, %54 : vector<4x10xf32>
    %56 = math.exp %55 : vector<4x10xf32>
    %cst_19 = arith.constant dense<0.000000e+00> : vector<4xf32>
    %57 = vector.multi_reduction <add>, %56, %cst_19 [1] : vector<4x10xf32> to vector<4xf32>
    %58 = vector.shape_cast %57 : vector<4xf32> to vector<4x1xf32>
    %59 = math.log %58 : vector<4x1xf32>
    %60 = vector.broadcast %59 : vector<4x1xf32> to vector<4x10xf32>
    %61 = arith.subf %55, %60 : vector<4x10xf32>
    %cst_20 = arith.constant 1.000000e-07 : f32
    %62 = vector.broadcast %cst_20 : f32 to vector<4x4xf32>
    %63 = arith.addf %23, %62 : vector<4x4xf32>
    %64 = math.log %63 : vector<4x4xf32>
    %65 = arith.mulf %23, %64 : vector<4x4xf32>
    %cst_21 = arith.constant dense<0.000000e+00> : vector<4xf32>
    %66 = vector.multi_reduction <add>, %65, %cst_21 [0] : vector<4x4xf32> to vector<4xf32>
    %67 = vector.shape_cast %66 : vector<4xf32> to vector<1x4xf32>
    %cst_22 = arith.constant 4.000000e+00 : f32
    %68 = vector.broadcast %cst_22 : f32 to vector<1x4xf32>
    %69 = arith.divf %67, %68 : vector<1x4xf32>
    %cst_23 = arith.constant 0.000000e+00 : f32
    %70 = vector.broadcast %cst_23 : f32 to vector<1x4xf32>
    %71 = arith.subf %70, %69 : vector<1x4xf32>
    %72 = math.exp %71 : vector<1x4xf32>
    %73 = vector.shape_cast %72 : vector<1x4xf32> to vector<1x1x4xf32>
    %cst_24 = arith.constant dense<0.000000e+00> : vector<1xf32>
    %74 = vector.multi_reduction <add>, %73, %cst_24 [1, 2] : vector<1x1x4xf32> to vector<1xf32>
    %75 = vector.shape_cast %74 : vector<1xf32> to vector<1x1x1xf32>
    %76 = vector.extract %75[0, 0, 0] : f32 from vector<1x1x1xf32>
    %77 = vector.broadcast %76 : f32 to vector<1x1xf32>
    %cst_25 = arith.constant 0.000000e+00 : f32
    %78 = vector.broadcast %cst_25 : f32 to vector<8x128xf32>
    %c0_26 = arith.constant 0 : index
    %c0_27 = arith.constant 0 : index
    %79 = vector.load %arg4[%c0_26, %c0_27] : memref<8x128xf32, #tpu.memory_space<vmem>>, vector<8x128xf32>
    tpu.vector_store %arg4[%c0_26, %c0_27], %78 {strides = array<i32>} : memref<8x128xf32, #tpu.memory_space<vmem>>, vector<8x128xf32>,
    %c0_28 = arith.constant 0 : index
    %c0_29 = arith.constant 0 : index
    %80 = vector.load %arg4[%c0_28, %c0_29] : memref<8x128xf32, #tpu.memory_space<vmem>>, vector<4x10xf32>
    tpu.vector_store %arg4[%c0_28, %c0_29], %61 {strides = array<i32>} : memref<8x128xf32, #tpu.memory_space<vmem>>, vector<4x10xf32>,
    %c0_30 = arith.constant 0 : index
    %c10 = arith.constant 10 : index
    %81 = vector.load %arg4[%c0_30, %c10] : memref<8x128xf32, #tpu.memory_space<vmem>>, vector<4x4xf32>
    tpu.vector_store %arg4[%c0_30, %c10], %23 {strides = array<i32>} : memref<8x128xf32, #tpu.memory_space<vmem>>, vector<4x4xf32>,
    %c0_31 = arith.constant 0 : index
    %c14 = arith.constant 14 : index
    %82 = vector.load %arg4[%c0_31, %c14] : memref<8x128xf32, #tpu.memory_space<vmem>>, vector<1x1xf32>
    tpu.vector_store %arg4[%c0_31, %c14], %77 {strides = array<i32>} : memref<8x128xf32, #tpu.memory_space<vmem>>, vector<1x1xf32>,
    return
  }
}

</mosaic_0001>

<llo_original>
// kernel: lid_xlsr53_forward.1
$region0: #{lid_xlsr53_forward.1}
  #allocation0 [shape = 'u32[]', space=smem, size = 0x4, offset = 0x4, fixed_abs, tag = 'smem constant byte address 0x4 - core index']
  #allocation1 [shape = 'u32[72,128]{1,0:T(1,128)}', space=vmem, size = 0x9000, scoped, tag = 'internal scratch']
  %s0 = inlined_call_operand.vmem [shape: bf16[4,1024], index: 0, kind: input, shape index: {}]
  %s1 = inlined_call_operand.hbm [shape: bf16[1024,128], index: 1, kind: input, shape index: {}]
  %s2 = inlined_call_operand.vmem [shape: f32[128,14], index: 2, kind: input, shape index: {}]
  %s3 = inlined_call_operand.vmem [shape: f32[8,128], index: 3, kind: input, shape index: {}]
  %s4 = inlined_call_operand.vmem [shape: f32[8,128], index: 4, kind: output, shape index: {}]
  %s5 = sld [smem:[#allocation0]]
  $region30: #{lid_xlsr53_forward.1} parent=0
    _
  %s7 = ssub.s32 1, %s5
  %s8 = scalar_select 0, %s7, %s5
  $region1: #{lid_xlsr53_forward.1} parent=0
    #allocation2 [shape = 'u8[262144]{0}', space=vmem, size = 0x40000, scoped, tag = 'input window, operand 1, single buffered']
    #allocation3 [shape = 's32[1]{0}', space=sflag, size = 0x4, scoped, tag = 'scoped memory for lid_xlsr53_forward.1']
    %9 = vsyncpa [#allocation3], 0
    // Predicated region
    $region2: #{lid_xlsr53_forward.1} parent=1 // pred_check
      _
    $region3: #{lid_xlsr53_forward.1} parent=1 // pred_check_branch
      %11 = sbr.rel (0) target = $region5
    $region4: #{lid_xlsr53_forward.1} parent=1 // pred_region
      _
    $region5: #{lid_xlsr53_forward.1} parent=1 // pred_fallthru
      _
    // Predicated region
    $region6: #{lid_xlsr53_forward.1} parent=1 // pred_check
      _
    $region7: #{lid_xlsr53_forward.1} parent=1 // pred_check_branch
      %13 = sbr.rel (0) target = $region9
    $region8: #{lid_xlsr53_forward.1} parent=1 // pred_region
      %15 = vsyncadd [#allocation3], 0
      %s16 = sshll.u32 %s1, 4
      %s17 = int_to_ptr.hbm [resolvable:$true] %s16
      %s18 = sshll.u32 [#allocation2], 4
      %s19 = int_to_ptr.vmem [resolvable:$true] %s18
      %24 = dma.hbm_to_vmem [thread:$0]  %s17, 8192, %s19, [#allocation3], 64, 64, 4
    $region9: #{lid_xlsr53_forward.1} parent=1 // pred_fallthru
      _
    // Predicated region
    $region10: #{lid_xlsr53_forward.1} parent=1 // pred_check
      _
    $region11: #{lid_xlsr53_forward.1} parent=1 // pred_check_branch
      %26 = sbr.rel (0) target = $region13
    $region12: #{lid_xlsr53_forward.1} parent=1 // pred_region
      _
    $region13: #{lid_xlsr53_forward.1} parent=1 // pred_fallthru
      _
    // Predicated region
    $region14: #{lid_xlsr53_forward.1} parent=1 // pred_check
      _
    $region15: #{lid_xlsr53_forward.1} parent=1 // pred_check_branch
      %28 = sbr.rel (0) target = $region17
    $region16: #{lid_xlsr53_forward.1} parent=1 // pred_region
      _
    $region17: #{lid_xlsr53_forward.1} parent=1 // pred_fallthru
      _
    // Predicated region
    $region18: #{lid_xlsr53_forward.1} parent=1 // pred_check
      _
    $region19: #{lid_xlsr53_forward.1} parent=1 // pred_check_branch
      %30 = sbr.rel (0) target = $region21
    $region20: #{lid_xlsr53_forward.1} parent=1 // pred_region
      %32 = dma.done [#allocation3], 8192
    $region21: #{lid_xlsr53_forward.1} parent=1 // pred_fallthru
      _
    %v33 = vld [vmem:[%s3] sm:$0xff]
    %v34 = vld [vmem:[%s2] sm:$0xff]
    %v35 = vld [vmem:[%s2 + $0x8] sm:$0xff]
    %v36 = vld [vmem:[%s2 + $0x10] sm:$0xff]
    %v37 = vld [vmem:[%s2 + $0x18] sm:$0xff]
    %v38 = vld [vmem:[%s2 + $0x20] sm:$0xff]
    %v39 = vld [vmem:[%s2 + $0x28] sm:$0xff]
    %v40 = vld [vmem:[%s2 + $0x30] sm:$0xff]
    %v41 = vld [vmem:[%s2 + $0x38] sm:$0xff]
    %v42 = vld [vmem:[%s2 + $0x40] sm:$0xff]
    %v43 = vld [vmem:[%s2 + $0x48] sm:$0xff]
    %v44 = vld [vmem:[%s2 + $0x50] sm:$0xff]
    %v45 = vld [vmem:[%s2 + $0x58] sm:$0xff]
    %v46 = vld [vmem:[%s2 + $0x60] sm:$0xff]
    %v47 = vld [vmem:[%s2 + $0x68] sm:$0xff]
    %v48 = vld [vmem:[%s2 + $0x70] sm:$0xff]
    %v49 = vld [vmem:[%s2 + $0x78] sm:$0xff]
    %v50 = vld [vmem:[%s0] sm:$0xff]
    %v51 = vld [vmem:[%s0 + $0x8] sm:$0xff]
    %v52 = vld [vmem:[#allocation2] sm:$0xf]
    %v53 = vld [vmem:[#allocation2 + $0x4] sm:$0xf]
    %v54 = vld [vmem:[#allocation2 + $0x8] sm:$0xf]
    %v55 = vld [vmem:[#allocation2 + $0xc] sm:$0xf]
    %v56 = vld [vmem:[#allocation2 + $0x10] sm:$0xf]
    %v57 = vld [vmem:[#allocation2 + $0x14] sm:$0xf]
    %v58 = vld [vmem:[#allocation2 + $0x18] sm:$0xf]
    %v59 = vld [vmem:[#allocation2 + $0x1c] sm:$0xf]
    %v60 = vld [vmem:[#allocation2 + $0x20] sm:$0xf]
    %v61 = vld [vmem:[#allocation2 + $0x24] sm:$0xf]
    %v62 = vld [vmem:[#allocation2 + $0x28] sm:$0xf]
    %v63 = vld [vmem:[#allocation2 + $0x2c] sm:$0xf]
    %v64 = vld [vmem:[#allocation2 + $0x30] sm:$0xf]
    %v65 = vld [vmem:[#allocation2 + $0x34] sm:$0xf]
    %v66 = vld [vmem:[#allocation2 + $0x38] sm:$0xf]
    %v67 = vld [vmem:[#allocation2 + $0x3c] sm:$0xf]
    %v68 = vld [vmem:[#allocation2 + $0x40] sm:$0xf]
    %v69 = vld [vmem:[#allocation2 + $0x44] sm:$0xf]
    %v70 = vld [vmem:[#allocation2 + $0x48] sm:$0xf]
    %v71 = vld [vmem:[#allocation2 + $0x4c] sm:$0xf]
    %v72 = vld [vmem:[#allocation2 + $0x50] sm:$0xf]
    %v73 = vld [vmem:[#allocation2 + $0x54] sm:$0xf]
    %v74 = vld [vmem:[#allocation2 + $0x58] sm:$0xf]
    %v75 = vld [vmem:[#allocation2 + $0x5c] sm:$0xf]
    %v76 = vld [vmem:[#allocation2 + $0x60] sm:$0xf]
    %v77 = vld [vmem:[#allocation2 + $0x64] sm:$0xf]
    %v78 = vld [vmem:[#allocation2 + $0x68] sm:$0xf]
    %v79 = vld [vmem:[#allocation2 + $0x6c] sm:$0xf]
    %v80 = vld [vmem:[#allocation2 + $0x70] sm:$0xf]
    %v81 = vld [vmem:[#allocation2 + $0x74] sm:$0xf]
    %v82 = vld [vmem:[#allocation2 + $0x78] sm:$0xf]
    %v83 = vld [vmem:[#allocation2 + $0x7c] sm:$0xf]
    %v84 = vld [vmem:[#allocation2 + $0x80] sm:$0xf]
    %v85 = vld [vmem:[#allocation2 + $0x84] sm:$0xf]
    %v86 = vld [vmem:[#allocation2 + $0x88] sm:$0xf]
    %v87 = vld [vmem:[#allocation2 + $0x8c] sm:$0xf]
    %v88 = vld [vmem:[#allocation2 + $0x90] sm:$0xf]
    %v89 = vld [vmem:[#allocation2 + $0x94] sm:$0xf]
    %v90 = vld [vmem:[#allocation2 + $0x98] sm:$0xf]
    %v91 = vld [vmem:[#allocation2 + $0x9c] sm:$0xf]
    %v92 = vld [vmem:[#allocation2 + $0xa0] sm:$0xf]
    %v93 = vld [vmem:[#allocation2 + $0xa4] sm:$0xf]
    %v94 = vld [vmem:[#allocation2 + $0xa8] sm:$0xf]
    %v95 = vld [vmem:[#allocation2 + $0xac] sm:$0xf]
    %v96 = vld [vmem:[#allocation2 + $0xb0] sm:$0xf]
    %v97 = vld [vmem:[#allocation2 + $0xb4] sm:$0xf]
    %v98 = vld [vmem:[#allocation2 + $0xb8] sm:$0xf]
    %v99 = vld [vmem:[#allocation2 + $0xbc] sm:$0xf]
    %v100 = vld [vmem:[#allocation2 + $0xc0] sm:$0xf]
    %v101 = vld [vmem:[#allocation2 + $0xc4] sm:$0xf]
    %v102 = vld [vmem:[#allocation2 + $0xc8] sm:$0xf]
    %v103 = vld [vmem:[#allocation2 + $0xcc] sm:$0xf]
    %v104 = vld [vmem:[#allocation2 + $0xd0] sm:$0xf]
    %v105 = vld [vmem:[#allocation2 + $0xd4] sm:$0xf]
    %v106 = vld [vmem:[#allocation2 + $0xd8] sm:$0xf]
    %v107 = vld [vmem:[#allocation2 + $0xdc] sm:$0xf]
    %v108 = vld [vmem:[#allocation2 + $0xe0] sm:$0xf]
    %v109 = vld [vmem:[#allocation2 + $0xe4] sm:$0xf]
    %v110 = vld [vmem:[#allocation2 + $0xe8] sm:$0xf]
    %v111 = vld [vmem:[#allocation2 + $0xec] sm:$0xf]
    %v112 = vld [vmem:[#allocation2 + $0xf0] sm:$0xf]
    %v113 = vld [vmem:[#allocation2 + $0xf4] sm:$0xf]
    %v114 = vld [vmem:[#allocation2 + $0xf8] sm:$0xf]
    %v115 = vld [vmem:[#allocation2 + $0xfc] sm:$0xf]
    %v116 = vld [vmem:[#allocation2 + $0x100] sm:$0xf]
    %v117 = vld [vmem:[#allocation2 + $0x104] sm:$0xf]
    %v118 = vld [vmem:[#allocation2 + $0x108] sm:$0xf]
    %v119 = vld [vmem:[#allocation2 + $0x10c] sm:$0xf]
    %v120 = vld [vmem:[#allocation2 + $0x110] sm:$0xf]
    %v121 = vld [vmem:[#allocation2 + $0x114] sm:$0xf]
    %v122 = vld [vmem:[#allocation2 + $0x118] sm:$0xf]
    %v123 = vld [vmem:[#allocation2 + $0x11c] sm:$0xf]
    %v124 = vld [vmem:[#allocation2 + $0x120] sm:$0xf]
    %v125 = vld [vmem:[#allocation2 + $0x124] sm:$0xf]
    %v126 = vld [vmem:[#allocation2 + $0x128] sm:$0xf]
    %v127 = vld [vmem:[#allocation2 + $0x12c] sm:$0xf]
    %v128 = vld [vmem:[#allocation2 + $0x130] sm:$0xf]
    %v129 = vld [vmem:[#allocation2 + $0x134] sm:$0xf]
    %v130 = vld [vmem:[#allocation2 + $0x138] sm:$0xf]
    %v131 = vld [vmem:[#allocation2 + $0x13c] sm:$0xf]
    %v132 = vld [vmem:[#allocation2 + $0x140] sm:$0xf]
    %v133 = vld [vmem:[#allocation2 + $0x144] sm:$0xf]
    %v134 = vld [vmem:[#allocation2 + $0x148] sm:$0xf]
    %v135 = vld [vmem:[#allocation2 + $0x14c] sm:$0xf]
    %v136 = vld [vmem:[#allocation2 + $0x150] sm:$0xf]
    %v137 = vld [vmem:[#allocation2 + $0x154] sm:$0xf]
    %v138 = vld [vmem:[#allocation2 + $0x158] sm:$0xf]
    %v139 = vld [vmem:[#allocation2 + $0x15c] sm:$0xf]
    %v140 = vld [vmem:[#allocation2 + $0x160] sm:$0xf]
    %v141 = vld [vmem:[#allocation2 + $0x164] sm:$0xf]
    %v142 = vld [vmem:[#allocation2 + $0x168] sm:$0xf]
    %v143 = vld [vmem:[#allocation2 + $0x16c] sm:$0xf]
    %v144 = vld [vmem:[#allocation2 + $0x170] sm:$0xf]
    %v145 = vld [vmem:[#allocation2 + $0x174] sm:$0xf]
    %v146 = vld [vmem:[#allocation2 + $0x178] sm:$0xf]
    %v147 = vld [vmem:[#allocation2 + $0x17c] sm:$0xf]
    %v148 = vld [vmem:[#allocation2 + $0x180] sm:$0xf]
    %v149 = vld [vmem:[#allocation2 + $0x184] sm:$0xf]
    %v150 = vld [vmem:[#allocation2 + $0x188] sm:$0xf]
    %v151 = vld [vmem:[#allocation2 + $0x18c] sm:$0xf]
    %v152 = vld [vmem:[#allocation2 + $0x190] sm:$0xf]
    %v153 = vld [vmem:[#allocation2 + $0x194] sm:$0xf]
    %v154 = vld [vmem:[#allocation2 + $0x198] sm:$0xf]
    %v155 = vld [vmem:[#allocation2 + $0x19c] sm:$0xf]
    %v156 = vld [vmem:[#allocation2 + $0x1a0] sm:$0xf]
    %v157 = vld [vmem:[#allocation2 + $0x1a4] sm:$0xf]
    %v158 = vld [vmem:[#allocation2 + $0x1a8] sm:$0xf]
    %v159 = vld [vmem:[#allocation2 + $0x1ac] sm:$0xf]
    %v160 = vld [vmem:[#allocation2 + $0x1b0] sm:$0xf]
    %v161 = vld [vmem:[#allocation2 + $0x1b4] sm:$0xf]
    %v162 = vld [vmem:[#allocation2 + $0x1b8] sm:$0xf]
    %v163 = vld [vmem:[#allocation2 + $0x1bc] sm:$0xf]
    %v164 = vld [vmem:[#allocation2 + $0x1c0] sm:$0xf]
    %v165 = vld [vmem:[#allocation2 + $0x1c4] sm:$0xf]
    %v166 = vld [vmem:[#allocation2 + $0x1c8] sm:$0xf]
    %v167 = vld [vmem:[#allocation2 + $0x1cc] sm:$0xf]
    %v168 = vld [vmem:[#allocation2 + $0x1d0] sm:$0xf]
    %v169 = vld [vmem:[#allocation2 + $0x1d4] sm:$0xf]
    %v170 = vld [vmem:[#allocation2 + $0x1d8] sm:$0xf]
    %v171 = vld [vmem:[#allocation2 + $0x1dc] sm:$0xf]
    %v172 = vld [vmem:[#allocation2 + $0x1e0] sm:$0xf]
    %v173 = vld [vmem:[#allocation2 + $0x1e4] sm:$0xf]
    %v174 = vld [vmem:[#allocation2 + $0x1e8] sm:$0xf]
    %v175 = vld [vmem:[#allocation2 + $0x1ec] sm:$0xf]
    %v176 = vld [vmem:[#allocation2 + $0x1f0] sm:$0xf]
    %v177 = vld [vmem:[#allocation2 + $0x1f4] sm:$0xf]
    %v178 = vld [vmem:[#allocation2 + $0x1f8] sm:$0xf]
    %v179 = vld [vmem:[#allocation2 + $0x1fc] sm:$0xf]
    %v180 = vperm.slane %v33, 0
    %182 = vst [vmem:[#allocation1] ss:$4 sm:$0xff] %v50
    %s184 = scalar_lea.vmem [#allocation1], 32
    %185 = vst [vmem:[%s184] ss:$4 sm:$0xff] %v51
    %v186 = vld.sshfl [vmem:[#allocation1] sm:$0xff pattern:$0x73625140]
    %v187 = vld.sshfl [vmem:[#allocation1 + $0x8] sm:$0xff pattern:$0x73625140]
    %v188 = vld.sshfl [vmem:[#allocation1 + $0x10] sm:$0xff pattern:$0x73625140]
    %v189 = vld.sshfl [vmem:[#allocation1 + $0x18] sm:$0xff pattern:$0x73625140]
    %v190 = vld.sshfl [vmem:[#allocation1 + $0x20] sm:$0xff pattern:$0x73625140]
    %v191 = vld.sshfl [vmem:[#allocation1 + $0x28] sm:$0xff pattern:$0x73625140]
    %v192 = vld.sshfl [vmem:[#allocation1 + $0x30] sm:$0xff pattern:$0x73625140]
    %v193 = vld.sshfl [vmem:[#allocation1 + $0x38] sm:$0xff pattern:$0x73625140]
    %v330 = vunpack.c.l.b16 %v52
    %v331 = vunpack.c.l.b16 %v53
    %v332 = vunpack.c.l.b16 %v54
    %v333 = vunpack.c.l.b16 %v55
    %v334 = vunpack.c.l.b16 %v56
    %v335 = vunpack.c.l.b16 %v57
    %v336 = vunpack.c.l.b16 %v58
    %v337 = vunpack.c.l.b16 %v59
    %v338 = vunpack.c.l.b16 %v60
    %v339 = vunpack.c.l.b16 %v61
    %v340 = vunpack.c.l.b16 %v62
    %v341 = vunpack.c.l.b16 %v63
    %v342 = vunpack.c.l.b16 %v64
    %v343 = vunpack.c.l.b16 %v65
    %v344 = vunpack.c.l.b16 %v66
    %v345 = vunpack.c.l.b16 %v67
    %v346 = vunpack.c.l.b16 %v68
    %v347 = vunpack.c.l.b16 %v69
    %v348 = vunpack.c.l.b16 %v70
    %v349 = vunpack.c.l.b16 %v71
    %v350 = vunpack.c.l.b16 %v72
    %v351 = vunpack.c.l.b16 %v73
    %v352 = vunpack.c.l.b16 %v74
    %v353 = vunpack.c.l.b16 %v75
    %v354 = vunpack.c.l.b16 %v76
    %v355 = vunpack.c.l.b16 %v77
    %v356 = vunpack.c.l.b16 %v78
    %v357 = vunpack.c.l.b16 %v79
    %v358 = vunpack.c.l.b16 %v80
    %v359 = vunpack.c.l.b16 %v81
    %v360 = vunpack.c.l.b16 %v82
    %v361 = vunpack.c.l.b16 %v83
    %v362 = vunpack.c.l.b16 %v84
    %v363 = vunpack.c.l.b16 %v85
    %v364 = vunpack.c.l.b16 %v86
    %v365 = vunpack.c.l.b16 %v87
    %v366 = vunpack.c.l.b16 %v88
    %v367 = vunpack.c.l.b16 %v89
    %v368 = vunpack.c.l.b16 %v90
    %v369 = vunpack.c.l.b16 %v91
    %v370 = vunpack.c.l.b16 %v92
    %v371 = vunpack.c.l.b16 %v93
    %v372 = vunpack.c.l.b16 %v94
    %v373 = vunpack.c.l.b16 %v95
    %v374 = vunpack.c.l.b16 %v96
    %v375 = vunpack.c.l.b16 %v97
    %v376 = vunpack.c.l.b16 %v98
    %v377 = vunpack.c.l.b16 %v99
    %v378 = vunpack.c.l.b16 %v100
    %v379 = vunpack.c.l.b16 %v101
    %v380 = vunpack.c.l.b16 %v102
    %v381 = vunpack.c.l.b16 %v103
    %v382 = vunpack.c.l.b16 %v104
    %v383 = vunpack.c.l.b16 %v105
    %v384 = vunpack.c.l.b16 %v106
    %v385 = vunpack.c.l.b16 %v107
    %v386 = vunpack.c.l.b16 %v108
    %v387 = vunpack.c.l.b16 %v109
    %v388 = vunpack.c.l.b16 %v110
    %v389 = vunpack.c.l.b16 %v111
    %v390 = vunpack.c.l.b16 %v112
    %v391 = vunpack.c.l.b16 %v113
    %v392 = vunpack.c.l.b16 %v114
    %v393 = vunpack.c.l.b16 %v115
    %v394 = vunpack.c.l.b16 %v116
    %v395 = vunpack.c.l.b16 %v117
    %v396 = vunpack.c.l.b16 %v118
    %v397 = vunpack.c.l.b16 %v119
    %v398 = vunpack.c.l.b16 %v120
    %v399 = vunpack.c.l.b16 %v121
    %v400 = vunpack.c.l.b16 %v122
    %v401 = vunpack.c.l.b16 %v123
    %v402 = vunpack.c.l.b16 %v124
    %v403 = vunpack.c.l.b16 %v125
    %v404 = vunpack.c.l.b16 %v126
    %v405 = vunpack.c.l.b16 %v127
    %v406 = vunpack.c.l.b16 %v128
    %v407 = vunpack.c.l.b16 %v129
    %v408 = vunpack.c.l.b16 %v130
    %v409 = vunpack.c.l.b16 %v131
    %v410 = vunpack.c.l.b16 %v132
    %v411 = vunpack.c.l.b16 %v133
    %v412 = vunpack.c.l.b16 %v134
    %v413 = vunpack.c.l.b16 %v135
    %v414 = vunpack.c.l.b16 %v136
    %v415 = vunpack.c.l.b16 %v137
    %v416 = vunpack.c.l.b16 %v138
    %v417 = vunpack.c.l.b16 %v139
    %v418 = vunpack.c.l.b16 %v140
    %v419 = vunpack.c.l.b16 %v141
    %v420 = vunpack.c.l.b16 %v142
    %v421 = vunpack.c.l.b16 %v143
    %v422 = vunpack.c.l.b16 %v144
    %v423 = vunpack.c.l.b16 %v145
    %v424 = vunpack.c.l.b16 %v146
    %v425 = vunpack.c.l.b16 %v147
    %v426 = vunpack.c.l.b16 %v148
    %v427 = vunpack.c.l.b16 %v149
    %v428 = vunpack.c.l.b16 %v150
    %v429 = vunpack.c.l.b16 %v151
    %v430 = vunpack.c.l.b16 %v152
    %v431 = vunpack.c.l.b16 %v153
    %v432 = vunpack.c.l.b16 %v154
    %v433 = vunpack.c.l.b16 %v155
    %v434 = vunpack.c.l.b16 %v156
    %v435 = vunpack.c.l.b16 %v157
    %v436 = vunpack.c.l.b16 %v158
    %v437 = vunpack.c.l.b16 %v159
    %v438 = vunpack.c.l.b16 %v160
    %v439 = vunpack.c.l.b16 %v161
    %v440 = vunpack.c.l.b16 %v162
    %v441 = vunpack.c.l.b16 %v163
    %v442 = vunpack.c.l.b16 %v164
    %v443 = vunpack.c.l.b16 %v165
    %v444 = vunpack.c.l.b16 %v166
    %v445 = vunpack.c.l.b16 %v167
    %v446 = vunpack.c.l.b16 %v168
    %v447 = vunpack.c.l.b16 %v169
    %v448 = vunpack.c.l.b16 %v170
    %v449 = vunpack.c.l.b16 %v171
    %v450 = vunpack.c.l.b16 %v172
    %v451 = vunpack.c.l.b16 %v173
    %v452 = vunpack.c.l.b16 %v174
    %v453 = vunpack.c.l.b16 %v175
    %v454 = vunpack.c.l.b16 %v176
    %v455 = vunpack.c.l.b16 %v177
    %v456 = vunpack.c.l.b16 %v178
    %v457 = vunpack.c.l.b16 %v179
    %v458 = vpack.c.b16 %v331, %v330
    %v459 = vpack.c.b16 %v333, %v332
    %v460 = vpack.c.b16 %v335, %v334
    %v461 = vpack.c.b16 %v337, %v336
    %v462 = vpack.c.b16 %v339, %v338
    %v463 = vpack.c.b16 %v341, %v340
    %v464 = vpack.c.b16 %v343, %v342
    %v465 = vpack.c.b16 %v345, %v344
    %v466 = vpack.c.b16 %v347, %v346
    %v467 = vpack.c.b16 %v349, %v348
    %v468 = vpack.c.b16 %v351, %v350
    %v469 = vpack.c.b16 %v353, %v352
    %v470 = vpack.c.b16 %v355, %v354
    %v471 = vpack.c.b16 %v357, %v356
    %v472 = vpack.c.b16 %v359, %v358
    %v473 = vpack.c.b16 %v361, %v360
    %v474 = vpack.c.b16 %v363, %v362
    %v475 = vpack.c.b16 %v365, %v364
    %v476 = vpack.c.b16 %v367, %v366
    %v477 = vpack.c.b16 %v369, %v368
    %v478 = vpack.c.b16 %v371, %v370
    %v479 = vpack.c.b16 %v373, %v372
    %v480 = vpack.c.b16 %v375, %v374
    %v481 = vpack.c.b16 %v377, %v376
    %v482 = vpack.c.b16 %v379, %v378
    %v483 = vpack.c.b16 %v381, %v380
    %v484 = vpack.c.b16 %v383, %v382
    %v485 = vpack.c.b16 %v385, %v384
    %v486 = vpack.c.b16 %v387, %v386
    %v487 = vpack.c.b16 %v389, %v388
    %v488 = vpack.c.b16 %v391, %v390
    %v489 = vpack.c.b16 %v393, %v392
    %v490 = vpack.c.b16 %v395, %v394
    %v491 = vpack.c.b16 %v397, %v396
    %v492 = vpack.c.b16 %v399, %v398
    %v493 = vpack.c.b16 %v401, %v400
    %v494 = vpack.c.b16 %v403, %v402
    %v495 = vpack.c.b16 %v405, %v404
    %v496 = vpack.c.b16 %v407, %v406
    %v497 = vpack.c.b16 %v409, %v408
    %v498 = vpack.c.b16 %v411, %v410
    %v499 = vpack.c.b16 %v413, %v412
    %v500 = vpack.c.b16 %v415, %v414
    %v501 = vpack.c.b16 %v417, %v416
    %v502 = vpack.c.b16 %v419, %v418
    %v503 = vpack.c.b16 %v421, %v420
    %v504 = vpack.c.b16 %v423, %v422
    %v505 = vpack.c.b16 %v425, %v424
    %v506 = vpack.c.b16 %v427, %v426
    %v507 = vpack.c.b16 %v429, %v428
    %v508 = vpack.c.b16 %v431, %v430
    %v509 = vpack.c.b16 %v433, %v432
    %v510 = vpack.c.b16 %v435, %v434
    %v511 = vpack.c.b16 %v437, %v436
    %v512 = vpack.c.b16 %v439, %v438
    %v513 = vpack.c.b16 %v441, %v440
    %v514 = vpack.c.b16 %v443, %v442
    %v515 = vpack.c.b16 %v445, %v444
    %v516 = vpack.c.b16 %v447, %v446
    %v517 = vpack.c.b16 %v449, %v448
    %v518 = vpack.c.b16 %v451, %v450
    %v519 = vpack.c.b16 %v453, %v452
    %v520 = vpack.c.b16 %v455, %v454
    %v521 = vpack.c.b16 %v457, %v456
    %586 = vmatpush.bf16.msra.mxu0 %v465
    %587 = vmatpush.bf16.msra.mxu0 %v464
    %588 = vmatpush.bf16.msra.mxu0 %v463
    %589 = vmatpush.bf16.msra.mxu0 %v462
    %590 = vmatpush.bf16.msra.mxu0 %v461
    %591 = vmatpush.bf16.msra.mxu0 %v460
    %592 = vmatpush.bf16.msra.mxu0 %v459
    %593 = vmatpush.bf16.msra.mxu0 %v458
    %594 = vmatmul.bf16.gmra.mxu0 %v186
    %v595 = vpop.f32.mrf.mxu0
    %v596 = vadd.f32 %v180, %v595
    %v597 = vpop.f32.mrf.mxu0
    %598 = vdwg.mxu0
    %599 = vmatpush.bf16.msra.mxu0 %v473
    %600 = vmatpush.bf16.msra.mxu0 %v472
    %601 = vmatpush.bf16.msra.mxu0 %v471
    %602 = vmatpush.bf16.msra.mxu0 %v470
    %603 = vmatpush.bf16.msra.mxu0 %v469
    %604 = vmatpush.bf16.msra.mxu0 %v468
    %605 = vmatpush.bf16.msra.mxu0 %v467
    %606 = vmatpush.bf16.msra.mxu0 %v466
    %607 = vmatmul.bf16.gmra.mxu0 %v187
    %v608 = vpop.f32.mrf.mxu0
    %v609 = vadd.f32 %v596, %v608
    %v610 = vpop.f32.mrf.mxu0
    %611 = vdwg.mxu0
    %612 = vmatpush.bf16.msra.mxu0 %v481
    %613 = vmatpush.bf16.msra.mxu0 %v480
    %614 = vmatpush.bf16.msra.mxu0 %v479
    %615 = vmatpush.bf16.msra.mxu0 %v478
    %616 = vmatpush.bf16.msra.mxu0 %v477
    %617 = vmatpush.bf16.msra.mxu0 %v476
    %618 = vmatpush.bf16.msra.mxu0 %v475
    %619 = vmatpush.bf16.msra.mxu0 %v474
    %620 = vmatmul.bf16.gmra.mxu0 %v188
    %v621 = vpop.f32.mrf.mxu0
    %v622 = vadd.f32 %v609, %v621
    %v623 = vpop.f32.mrf.mxu0
    %624 = vdwg.mxu0
    %625 = vmatpush.bf16.msra.mxu0 %v489
    %626 = vmatpush.bf16.msra.mxu0 %v488
    %627 = vmatpush.bf16.msra.mxu0 %v487
    %628 = vmatpush.bf16.msra.mxu0 %v486
    %629 = vmatpush.bf16.msra.mxu0 %v485
    %630 = vmatpush.bf16.msra.mxu0 %v484
    %631 = vmatpush.bf16.msra.mxu0 %v483
    %632 = vmatpush.bf16.msra.mxu0 %v482
    %633 = vmatmul.bf16.gmra.mxu0 %v189
    %v634 = vpop.f32.mrf.mxu0
    %v635 = vadd.f32 %v622, %v634
    %v636 = vpop.f32.mrf.mxu0
    %637 = vdwg.mxu0
    %638 = vmatpush.bf16.msra.mxu0 %v497
    %639 = vmatpush.bf16.msra.mxu0 %v496
    %640 = vmatpush.bf16.msra.mxu0 %v495
    %641 = vmatpush.bf16.msra.mxu0 %v494
    %642 = vmatpush.bf16.msra.mxu0 %v493
    %643 = vmatpush.bf16.msra.mxu0 %v492
    %644 = vmatpush.bf16.msra.mxu0 %v491
    %645 = vmatpush.bf16.msra.mxu0 %v490
    %646 = vmatmul.bf16.gmra.mxu0 %v190
    %v647 = vpop.f32.mrf.mxu0
    %v648 = vadd.f32 %v635, %v647
    %v649 = vpop.f32.mrf.mxu0
    %650 = vdwg.mxu0
    %651 = vmatpush.bf16.msra.mxu0 %v505
    %652 = vmatpush.bf16.msra.mxu0 %v504
    %653 = vmatpush.bf16.msra.mxu0 %v503
    %654 = vmatpush.bf16.msra.mxu0 %v502
    %655 = vmatpush.bf16.msra.mxu0 %v501
    %656 = vmatpush.bf16.msra.mxu0 %v500
    %657 = vmatpush.bf16.msra.mxu0 %v499
    %658 = vmatpush.bf16.msra.mxu0 %v498
    %659 = vmatmul.bf16.gmra.mxu0 %v191
    %v660 = vpop.f32.mrf.mxu0
    %v661 = vadd.f32 %v648, %v660
    %v662 = vpop.f32.mrf.mxu0
    %663 = vdwg.mxu0
    %664 = vmatpush.bf16.msra.mxu0 %v513
    %665 = vmatpush.bf16.msra.mxu0 %v512
    %666 = vmatpush.bf16.msra.mxu0 %v511
    %667 = vmatpush.bf16.msra.mxu0 %v510
    %668 = vmatpush.bf16.msra.mxu0 %v509
    %669 = vmatpush.bf16.msra.mxu0 %v508
    %670 = vmatpush.bf16.msra.mxu0 %v507
    %671 = vmatpush.bf16.msra.mxu0 %v506
    %672 = vmatmul.bf16.gmra.mxu0 %v192
    %v673 = vpop.f32.mrf.mxu0
    %v674 = vadd.f32 %v661, %v673
    %v675 = vpop.f32.mrf.mxu0
    %676 = vdwg.mxu0
    %677 = vmatpush.bf16.msra.mxu0 %v521
    %678 = vmatpush.bf16.msra.mxu0 %v520
    %679 = vmatpush.bf16.msra.mxu0 %v519
    %680 = vmatpush.bf16.msra.mxu0 %v518
    %681 = vmatpush.bf16.msra.mxu0 %v517
    %682 = vmatpush.bf16.msra.mxu0 %v516
    %683 = vmatpush.bf16.msra.mxu0 %v515
    %684 = vmatpush.bf16.msra.mxu0 %v514
    %685 = vmatmul.bf16.gmra.mxu0 %v193
    %v686 = vpop.f32.mrf.mxu0
    %v687 = vadd.f32 %v674, %v686
    %v688 = vpop.f32.mrf.mxu0
    %689 = vdwg.mxu0
    %690 = vmatpush.msra.mxu0 %v49
    %691 = vmatpush.msra.mxu0 %v48
    %692 = vmatpush.msra.mxu0 %v47
    %693 = vmatpush.msra.mxu0 %v46
    %694 = vmatpush.msra.mxu0 %v45
    %695 = vmatpush.msra.mxu0 %v44
    %696 = vmatpush.msra.mxu0 %v43
    %697 = vmatpush.msra.mxu0 %v42
    %698 = vmatpush.msra.mxu0 %v41
    %699 = vmatpush.msra.mxu0 %v40
    %700 = vmatpush.msra.mxu0 %v39
    %701 = vmatpush.msra.mxu0 %v38
    %702 = vmatpush.msra.mxu0 %v37
    %703 = vmatpush.msra.mxu0 %v36
    %704 = vmatpush.msra.mxu0 %v35
    %705 = vmatpush.msra.mxu0 %v34
    %706 = vmatmul.f32.gmra.mxu0 %v687
    %v707 = vpop.f32.mrf.mxu0
    %v708 = vadd.f32 0.0, %v707
    %709 = vdwg.mxu0
    %vm710 = vcmask 27648
    %v711 = vsel %vm710, %v708, -inf
    %712 = vmax.xlane.f32.xlu0 %v711
    %v713 = vpop.xlane.xlu0 %712
    %v714 = vsub.f32 %v708, %v713
    %v715 = vmul.f32 %v714, 1.442695
    %v716 = vpow.pop %v715
    %v717 = vsel %vm710, %v716, 0.0
    %718 = vadd.xlane.f32.xlu0 %v717
    %v719 = vpop.xlane.xlu0 %718
    %v720 = vrcp.pop %v719
    %v721 = vmul.f32 %v719, %v720
    %v722 = vsub.f32 1.0, %v721
    %v723 = vmul.f32 %v720, %v722
    %v724 = vadd.f32 %v720, %v723
    %vm725 = vweird.f32 %v719
    %vm726 = vweird.f32 %v720
    %vm727 = vmor %vm725, %vm726
    %v728 = vsel %vm727, %v720, %v724
    %v729 = vand.u32 2147483647, %v719
    %vm730 = vcmp.eq.f32.partialorder %v729, 8.507059e+37
    %v731 = vand.u32 %v719, 2147483648
    %v732 = vor.u32 1.1754944e-38, %v731
    %v733 = vsel %vm730, %v732, %v728
    %v734 = vmul.f32 %v716, %v733
    %v736 = vrot.slane %v33, 1
    %vm737 = vcmask 31744
    %v739 = vsel %vm737, %v734, 0
    %vm741 = vcmask 1043456
    %v742 = vsel %vm741, %v736, 0
    %744 = vmatpush.msra.mxu0 0.0
    %745 = vmatpush.msra.mxu0 0.0
    %746 = vmatpush.msra.mxu0 0.0
    %747 = vmatpush.msra.mxu0 0.0
    %748 = vmatpush.msra.mxu0 0.0
    %749 = vmatpush.msra.mxu0 0.0
    %750 = vmatpush.msra.mxu0 0.0
    %751 = vmatpush.msra.mxu0 0.0
    %752 = vmatpush.msra.mxu0 0.0
    %753 = vmatpush.msra.mxu0 0.0
    %754 = vmatpush.msra.mxu0 0.0
    %755 = vmatpush.msra.mxu0 0.0
    %756 = vmatpush.msra.mxu0 0.0
    %757 = vmatpush.msra.mxu0 0.0
    %758 = vmatpush.msra.mxu0 0.0
    %759 = vmatpush.msra.mxu0 %v742
    %760 = vmatmul.f32.gmra.mxu0 %v739
    %v761 = vpop.f32.mrf.mxu0
    %v762 = vadd.f32 0.0, %v761
    %763 = vdwg.mxu0
    %v764 = vsel %vm741, %v762, 0.0
    %v765 = vrot.slane %v764, 4
    %v766 = vadd.f32 %v764, %v765
    %v767 = vrot.slane %v766, 2
    %v768 = vadd.f32 %v766, %v767
    %v769 = vrot.slane %v768, 1
    %v770 = vadd.f32 %v768, %v769
    %v771 = vrcp.pop 4.0
    %v772 = vmul.f32 4.0, %v771
    %v773 = vsub.f32 1.0, %v772
    %v774 = vmul.f32 %v771, %v773
    %v775 = vadd.f32 %v771, %v774
    %vm776 = vweird.f32 %v771
    %v777 = vsel %vm776, %v771, %v775
    %v778 = vmul.f32 %v770, %v777
    %v779 = vsub.f32 %v762, %v778
    %v780 = vmul.f32 %v779, %v779
    %v781 = vsel %vm741, %v780, 0.0
    %v782 = vrot.slane %v781, 4
    %v783 = vadd.f32 %v781, %v782
    %v784 = vrot.slane %v783, 2
    %v785 = vadd.f32 %v783, %v784
    %v786 = vrot.slane %v785, 1
    %v787 = vadd.f32 %v785, %v786
    %v788 = vmul.f32 %v787, %v777
    %v789 = vadd.f32 %v788, 1e-05
    %v790 = vrsqrt.pop %v789
    %v791 = vmul.f32 %v790, %v789
    %v792 = vmul.f32 %v791, %v790
    %v793 = vmul.f32 0.5, %v792
    %v794 = vsub.f32 1.5, %v793
    %v795 = vmul.f32 %v790, %v794
    %vm796 = vweird.f32 %v789
    %vm797 = vweird.f32 %v790
    %vm798 = vmor %vm796, %vm797
    %v799 = vsel %vm798, %v790, %v795
    %v800 = vmul.f32 %v779, %v799
    %v801 = vperm.slane %v33, 5
    %v802 = vmul.f32 %v800, %v801
    %v803 = vperm.slane %v33, 6
    %v804 = vadd.f32 %v802, %v803
    %v805 = vmax.f32 %v804, 0.0
    %v806 = vperm.slane %v33, 7
    %823 = vrot.lane.b32.xlu0 %v34, 124
    %v824 = vpop.permute.xlu0 %823
    %825 = vrot.lane.b32.xlu0 %v35, 124
    %v826 = vpop.permute.xlu0 %825
    %827 = vrot.lane.b32.xlu0 %v36, 124
    %v828 = vpop.permute.xlu0 %827
    %829 = vrot.lane.b32.xlu0 %v37, 124
    %v830 = vpop.permute.xlu0 %829
    %831 = vrot.lane.b32.xlu0 %v38, 124
    %v832 = vpop.permute.xlu0 %831
    %833 = vrot.lane.b32.xlu0 %v39, 124
    %v834 = vpop.permute.xlu0 %833
    %835 = vrot.lane.b32.xlu0 %v40, 124
    %v836 = vpop.permute.xlu0 %835
    %837 = vrot.lane.b32.xlu0 %v41, 124
    %v838 = vpop.permute.xlu0 %837
    %839 = vrot.lane.b32.xlu0 %v42, 124
    %v840 = vpop.permute.xlu0 %839
    %841 = vrot.lane.b32.xlu0 %v43, 124
    %v842 = vpop.permute.xlu0 %841
    %843 = vrot.lane.b32.xlu0 %v44, 124
    %v844 = vpop.permute.xlu0 %843
    %845 = vrot.lane.b32.xlu0 %v45, 124
    %v846 = vpop.permute.xlu0 %845
    %847 = vrot.lane.b32.xlu0 %v46, 124
    %v848 = vpop.permute.xlu0 %847
    %849 = vrot.lane.b32.xlu0 %v47, 124
    %v850 = vpop.permute.xlu0 %849
    %851 = vrot.lane.b32.xlu0 %v48, 124
    %v852 = vpop.permute.xlu0 %851
    %853 = vrot.lane.b32.xlu0 %v49, 124
    %v854 = vpop.permute.xlu0 %853
    %871 = vmatpush.msra.mxu0 %v854
    %872 = vmatpush.msra.mxu0 %v852
    %873 = vmatpush.msra.mxu0 %v850
    %874 = vmatpush.msra.mxu0 %v848
    %875 = vmatpush.msra.mxu0 %v846
    %876 = vmatpush.msra.mxu0 %v844
    %877 = vmatpush.msra.mxu0 %v842
    %878 = vmatpush.msra.mxu0 %v840
    %879 = vmatpush.msra.mxu0 %v838
    %880 = vmatpush.msra.mxu0 %v836
    %881 = vmatpush.msra.mxu0 %v834
    %882 = vmatpush.msra.mxu0 %v832
    %883 = vmatpush.msra.mxu0 %v830
    %884 = vmatpush.msra.mxu0 %v828
    %885 = vmatpush.msra.mxu0 %v826
    %886 = vmatpush.msra.mxu0 %v824
    %887 = vmatmul.f32.gmra.mxu0 %v805
    %v888 = vpop.f32.mrf.mxu0
    %v889 = vadd.f32 %v806, %v888
    %890 = vdwg.mxu0
    %vm891 = vcmask 76800
    %v892 = vsel %vm891, %v889, -inf
    %893 = vmax.xlane.f32.xlu0 %v892
    %v894 = vpop.xlane.xlu0 %893
    %v895 = vsub.f32 %v889, %v894
    %v896 = vmul.f32 %v895, 1.442695
    %v897 = vpow.pop %v896
    %v898 = vsel %vm891, %v897, 0.0
    %899 = vadd.xlane.f32.xlu0 %v898
    %v900 = vpop.xlane.xlu0 %899
    %v901 = vlog2.pop %v900
    %v902 = vmul.f32 %v901, 0.6931472
    %v903 = vsub.f32 %v895, %v902
    %v904 = vadd.f32 %v734, 1e-07
    %v905 = vlog2.pop %v904
    %v906 = vmul.f32 %v905, 0.6931472
    %v907 = vmul.f32 %v734, %v906
    %v908 = vsel %vm710, %v907, 0.0
    %v909 = vrot.slane %v908, 4
    %v910 = vadd.f32 %v908, %v909
    %v911 = vrot.slane %v910, 2
    %v912 = vadd.f32 %v910, %v911
    %v913 = vrot.slane %v912, 1
    %v914 = vadd.f32 %v912, %v913
    %v915 = vmul.f32 %v914, %v777
    %v916 = vsub.f32 0.0, %v915
    %v917 = vmul.f32 %v916, 1.442695
    %v918 = vpow.pop %v917
    %vm919 = vcmask 24576
    %v920 = vsel %vm919, %v918, 0.0
    %921 = vadd.xlane.f32.xlu0 %v920
    %v922 = vpop.xlane.xlu0 %921
    %v923 = vrot.slane %v922, 4
    %v924 = vadd.f32 %v922, %v923
    %v925 = vrot.slane %v924, 2
    %v926 = vadd.f32 %v924, %v925
    %v927 = vrot.slane %v926, 1
    %v928 = vadd.f32 %v926, %v927
    %s929 = vtos %v928
    %v930 = vstv %s929
    %931 = vst [vmem:[%s4] sm:$0xff] 0.0
    %932 = vst.msk [vmem:[%s4] sm:$0xf] %vm891, %v903
    %933 = vrot.lane.b32.xlu0 %v734, 10
    %v934 = vpop.permute.xlu0 %933
    %vm936 = vcmask 109648
    %937 = vst.msk [vmem:[%s4] sm:$0xf] %vm936, %v934
    %vm938 = vcmask 114800
    %939 = vst.msk [vmem:[%s4] sm:$0x1] %vm938, %v930
    // Predicated region
    $region22: #{lid_xlsr53_forward.1} parent=1 // pred_check
      _
    $region23: #{lid_xlsr53_forward.1} parent=1 // pred_check_branch
      %941 = sbr.rel (0) target = $region25
    $region24: #{lid_xlsr53_forward.1} parent=1 // pred_region
      _
    $region25: #{lid_xlsr53_forward.1} parent=1 // pred_fallthru
      _
    // Predicated region
    $region26: #{lid_xlsr53_forward.1} parent=1 // pred_check
      _
    $region27: #{lid_xlsr53_forward.1} parent=1 // pred_check_branch
      %943 = sbr.rel (0) target = $region29
    $region28: #{lid_xlsr53_forward.1} parent=1 // pred_region
      _
    $region29: #{lid_xlsr53_forward.1} parent=1 // pred_fallthru
      _
    %944 = vsyncpa [#allocation3], 1

</llo_original>
